<compile_context>
chip_gen: v6e
topology: v6e:2x2x1
jax: 0.10.0
libtpu: 0.0.40
codegen_flags: <defaults>
</compile_context>

<pallas_src>
import jax
import jax.numpy as jnp
from jax.experimental import pallas as pl
from jax.experimental.pallas import tpu as pltpu

FEAT_DIM = 2048
_LANE = 128


def _round_up(v, m):
    return -(-v // m) * m


def _vmem_capacity_bytes():
    try:
        return int(pltpu.get_tpu_info().vmem_capacity_bytes)
    except Exception:
        return 64 * 1024 * 1024  # conservative fallback (v7x per-TensorCore VMEM)


def _pool_linear_kernel(x_ref, w_ref, b_ref, y_ref, f_ref):
    # x_ref: (TN, HW, C) with C lane-dense; w_ref: (C, NC); b_ref: (1, NC) f32.
    inv_hw = jnp.float32(1.0 / x_ref.shape[1])
    # Global average pool over HW (sublane axis) with f32 accumulation:
    # cheap VPU adds, no cross-lane XLU reduce, f stays lane-dense on C.
    f = jnp.sum(x_ref[...], axis=1, dtype=jnp.float32) * inv_hw          # (TN, C)
    f_ref[...] = f.astype(f_ref.dtype)
    y = jnp.dot(f.astype(w_ref.dtype), w_ref[...],
                preferred_element_type=jnp.float32)                      # (TN, NC)
    y_ref[...] = (y + b_ref[...]).astype(y_ref.dtype)


def _linear_kernel(x_ref, w_ref, b_ref, y_ref, f_ref):
    # Already-pooled (TN, C) inputs: f = x, y = f @ W + b.
    x = x_ref[...]
    f_ref[...] = x
    y = jnp.dot(x.astype(w_ref.dtype), w_ref[...],
                preferred_element_type=jnp.float32)
    y_ref[...] = (y + b_ref[...]).astype(y_ref.dtype)


def _pick_batch_tile(n, per_row_bytes, resident_bytes, usable_bytes, sub_mult):
    """Largest double-buffered batch tile that fits the working-set budget,
    rounded to a packed-sublane multiple so output stores are unmasked."""
    avail = max(usable_bytes - resident_bytes, 0)
    tn = max(1, avail // (2 * per_row_bytes))      # 2x: double-buffered pipeline
    tn = min(tn, 1024, n)
    if tn >= n:
        tn = n
        # Give the "parallel" batch axis >= 2 grid steps when possible so a
        # dual-TensorCore chip (v7x megacore) shards the grid instead of
        # idling one core.
        if n >= 2 * sub_mult:
            tn = _round_up(-(-n // 2), sub_mult)
    else:
        tn = max(sub_mult, (tn // sub_mult) * sub_mult)
    return tn


def feature_part_forward(x, weight, bias):
    """Replicates FeaturePart.forward.

    x      : (N, C, H, W) NCHW (like PyTorch) or (N, C) already-pooled features
    weight : (num_classes, C)   -- PyTorch nn.Linear weight layout
    bias   : (num_classes,)
    returns (y, f) with y: (N, num_classes), f: (N, C)
    """
    num_classes = weight.shape[0]
    out_dtype = x.dtype
    itemsize = jnp.dtype(x.dtype).itemsize
    sub_mult = 8 * max(1, 4 // itemsize)            # f32 -> 8, bf16 -> 16

    # MXU input dtype: keep bf16 native, otherwise f32.  Cast once, outside
    # the kernel, so no per-grid-step cast of the resident weight.
    mm_dtype = jnp.bfloat16 if x.dtype == jnp.bfloat16 else jnp.float32
    w_k = jnp.transpose(weight, (1, 0)).astype(mm_dtype)      # (C, NC), one-off
    b_k = bias.reshape(1, num_classes).astype(jnp.float32)    # bias added in f32

    vmem_cap = _vmem_capacity_bytes()
    usable = vmem_cap // 2                          # pipeline working-set budget

    if x.ndim > 2:
        n, c, h, w = x.shape
        hw = h * w
        # One-off relayout so C (2048) sits on the 128-lane minor axis and HW
        # on the sublane axis: dense VMEM tiles and dense HBM->VMEM DMA rows.
        # TODO(synk): accept NHWC directly from the producer to skip this pass.
        x_k = jnp.transpose(x.reshape(n, c, hw), (0, 2, 1))    # (N, HW, C)
        kernel = _pool_linear_kernel
        cpad = _round_up(c, _LANE)
        hwpad = _round_up(hw, sub_mult)
        per_row_x = hwpad * cpad * itemsize
        # TODO(synk): for very large H*W (a single batch row overflowing VMEM)
        # add a trailing "arbitrary" HW-reduction grid axis with an f32
        # accumulator scratch.
        flops = n * c * hw + 2 * n * c * num_classes
    else:
        n, c = x.shape
        x_k = x
        kernel = _linear_kernel
        cpad = _round_up(c, _LANE)
        hwpad = 0
        per_row_x = cpad * itemsize
        flops = 2 * n * c * num_classes

    ncp = _round_up(num_classes, _LANE)             # lane-padded width in VMEM
    w_bytes = c * ncp * jnp.dtype(mm_dtype).itemsize
    resident = 2 * w_bytes + 2 * _LANE * 4          # resident W + b (x2 slack)
    per_row = per_row_x + cpad * itemsize + ncp * itemsize
    tn = _pick_batch_tile(n, per_row, resident, usable, sub_mult)

    if x.ndim > 2:
        x_spec = pl.BlockSpec((tn, hw, c), lambda i: (i, 0, 0))
        x_tile_bytes = tn * hwpad * cpad * itemsize
    else:
        x_spec = pl.BlockSpec((tn, c), lambda i: (i, 0))
        x_tile_bytes = _round_up(tn, sub_mult) * cpad * itemsize

    f_tile_bytes = _round_up(tn, sub_mult) * cpad * itemsize
    y_tile_bytes = _round_up(tn, sub_mult) * ncp * itemsize
    vmem_need = resident + 2 * (x_tile_bytes + f_tile_bytes + y_tile_bytes)
    vmem_limit = int(min(vmem_cap, max(vmem_need + (4 << 20), 32 << 20)))

    bytes_accessed = int(x_k.size * itemsize            # stream x once
                         + n * c * itemsize             # f
                         + n * num_classes * itemsize   # y (exact width)
                         + c * num_classes * jnp.dtype(mm_dtype).itemsize
                         + num_classes * 4)
    cost = pl.CostEstimate(flops=int(flops), transcendentals=0,
                           bytes_accessed=bytes_accessed)

    y, f = pl.pallas_call(
        kernel,
        out_shape=(
            jax.ShapeDtypeStruct((n, num_classes), out_dtype),
            jax.ShapeDtypeStruct((n, c), out_dtype),
        ),
        grid=(pl.cdiv(n, tn),),
        in_specs=[
            x_spec,
            pl.BlockSpec((c, num_classes), lambda i: (0, 0)),   # resident W
            pl.BlockSpec((1, num_classes), lambda i: (0, 0)),   # resident b
        ],
        out_specs=(
            pl.BlockSpec((tn, num_classes), lambda i: (i, 0)),  # exact width, no post-slice
            pl.BlockSpec((tn, c), lambda i: (i, 0)),
        ),
        compiler_params=pltpu.CompilerParams(
            dimension_semantics=("parallel",),
            vmem_limit_bytes=vmem_limit),
        cost_estimate=cost,
    )(x_k, w_k, b_k)

    return y, f


if __name__ == "__main__":
    num_classes = 16
    N, C, H, W = 2, FEAT_DIM, 4, 4   # C must be 2048 to match nn.Linear(2048, ...)

    key = jax.random.PRNGKey(0)
    kx, kw, kb = jax.random.split(key, 3)

    x = jax.random.normal(kx, (N, C, H, W), dtype=jnp.float32)
    # deterministic synthetic parameters (no checkpoint load)
    weight = jax.random.normal(kw, (num_classes, C), dtype=jnp.float32) * 0.02
    bias = jax.random.normal(kb, (num_classes,), dtype=jnp.float32) * 0.01

    # 4-D (NCHW) branch
    y, f = feature_part_forward(x, weight, bias)
    jax.block_until_ready((y, f))

    # pure-JAX reference
    f_ref = jnp.mean(x.reshape(N, C, H * W), axis=-1)
    y_ref = f_ref @ weight.T + bias
    assert y.shape == (N, num_classes) and f.shape == (N, C)
    assert jnp.allclose(f, f_ref, atol=1e-5, rtol=1e-5)
    assert jnp.allclose(y, y_ref, atol=1e-4, rtol=1e-4)

    # already-pooled (N, C) branch
    y2, f2 = feature_part_forward(f_ref, weight, bias)
    jax.block_until_ready((y2, f2))
    assert jnp.allclose(f2, f_ref, atol=1e-6, rtol=1e-6)
    assert jnp.allclose(y2, y_ref, atol=1e-4, rtol=1e-4)

    print("KERNEL_OK")
</pallas_src>

<mosaic_0001>
module attributes {stable_mosaic.version = 11 : i64} {
  func.func @_pool_linear_kernel(%arg0: i32, %arg1: memref<2x16x2048xf32, #tpu.memory_space<vmem>>, %arg2: memref<2048x16xf32, #tpu.memory_space<vmem>>, %arg3: memref<1x16xf32, #tpu.memory_space<vmem>>, %arg4: memref<2x16xf32, #tpu.memory_space<vmem>>, %arg5: memref<2x2048xf32, #tpu.memory_space<vmem>>) attributes {dimension_semantics = [#tpu.dimension_semantics<parallel>], iteration_bounds = array<i64: 1>, scalar_prefetch = 0 : i64, scratch_operands = 0 : i64, tpu.core_type = #tpu.core_type<tc>, window_params = [{transform_indices = @transform_0, window_bounds = array<i64: 2, 16, 2048>}, {pipeline_mode = #tpu.pipeline_mode<synchronous>, transform_indices = @transform_1, window_bounds = array<i64: 2048, 16>}, {pipeline_mode = #tpu.pipeline_mode<synchronous>, transform_indices = @transform_2, window_bounds = array<i64: 1, 16>}, {transform_indices = @transform_3, window_bounds = array<i64: 2, 16>}, {transform_indices = @transform_4, window_bounds = array<i64: 2, 2048>}]} {
    %c0 = arith.constant 0 : index
    %c0_0 = arith.constant 0 : index
    %c0_1 = arith.constant 0 : index
    %0 = vector.load %arg1[%c0, %c0_0, %c0_1] : memref<2x16x2048xf32, #tpu.memory_space<vmem>>, vector<2x16x2048xf32>
    %cst = arith.constant dense<0.000000e+00> : vector<2x2048xf32>
    %1 = vector.multi_reduction <add>, %0, %cst [1] : vector<2x16x2048xf32> to vector<2x2048xf32>
    %cst_2 = arith.constant 6.250000e-02 : f32
    %2 = vector.broadcast %cst_2 : f32 to vector<2x2048xf32>
    %3 = arith.mulf %1, %2 : vector<2x2048xf32>
    %c0_3 = arith.constant 0 : index
    %c0_4 = arith.constant 0 : index
    %4 = vector.load %arg5[%c0_3, %c0_4] : memref<2x2048xf32, #tpu.memory_space<vmem>>, vector<2x2048xf32>
    tpu.vector_store %arg5[%c0_3, %c0_4], %3 {strides = array<i32>} : memref<2x2048xf32, #tpu.memory_space<vmem>>, vector<2x2048xf32>,
    %c0_5 = arith.constant 0 : index
    %c0_6 = arith.constant 0 : index
    %5 = vector.load %arg2[%c0_5, %c0_6] : memref<2048x16xf32, #tpu.memory_space<vmem>>, vector<2048x16xf32>
    %cst_7 = arith.constant dense<0.000000e+00> : vector<2x16xf32>
    %6 = tpu.matmul %3, %5, %cst_7 {dimension_numbers = #tpu.dot_dimension_numbers<[1], [0], [0], [1], [0, 0, 1, 1], [], []>} : vector<2x2048xf32>, vector<2048x16xf32>, vector<2x16xf32> -> vector<2x16xf32>
    %c0_8 = arith.constant 0 : index
    %c0_9 = arith.constant 0 : index
    %7 = vector.load %arg3[%c0_8, %c0_9] : memref<1x16xf32, #tpu.memory_space<vmem>>, vector<1x16xf32>
    %8 = vector.broadcast %7 : vector<1x16xf32> to vector<2x16xf32>
    %9 = arith.addf %6, %8 : vector<2x16xf32>
    %c0_10 = arith.constant 0 : index
    %c0_11 = arith.constant 0 : index
    %10 = vector.load %arg4[%c0_10, %c0_11] : memref<2x16xf32, #tpu.memory_space<vmem>>, vector<2x16xf32>
    tpu.vector_store %arg4[%c0_10, %c0_11], %9 {strides = array<i32>} : memref<2x16xf32, #tpu.memory_space<vmem>>, vector<2x16xf32>,
    return
  }
  func.func @transform_0(%arg0: i32) -> (i32, i32, i32) {
    %c0_i32 = arith.constant 0 : i32
    %c0_i32_0 = arith.constant 0 : i32
    %c0_i32_1 = arith.constant 0 : i32
    return %arg0, %c0_i32, %c0_i32_0 : i32, i32, i32
  }
  func.func @transform_1(%arg0: i32) -> (i32, i32) {
    %c0_i32 = arith.constant 0 : i32
    %c0_i32_0 = arith.constant 0 : i32
    %c0_i32_1 = arith.constant 0 : i32
    return %c0_i32, %c0_i32_0 : i32, i32
  }
  func.func @transform_2(%arg0: i32) -> (i32, i32) {
    %c0_i32 = arith.constant 0 : i32
    %c0_i32_0 = arith.constant 0 : i32
    %c0_i32_1 = arith.constant 0 : i32
    return %c0_i32, %c0_i32_0 : i32, i32
  }
  func.func @transform_3(%arg0: i32) -> (i32, i32) {
    %c0_i32 = arith.constant 0 : i32
    %c0_i32_0 = arith.constant 0 : i32
    return %arg0, %c0_i32 : i32, i32
  }
  func.func @transform_4(%arg0: i32) -> (i32, i32) {
    %c0_i32 = arith.constant 0 : i32
    %c0_i32_0 = arith.constant 0 : i32
    return %arg0, %c0_i32 : i32, i32
  }
}

</mosaic_0001>

<llo_original>
// kernel: tpu_custom_call.1
$region0: #{tpu_custom_call.1}
  #allocation0 [shape = 'u32[]', space=smem, size = 0x4, offset = 0x4, fixed_abs, tag = 'smem constant byte address 0x4 - core index']
  #allocation1 [shape = 'u32[144,128]{1,0:T(1,128)}', space=vmem, size = 0x12000, scoped, tag = 'internal scratch']
  %s0 = inlined_call_operand.vmem [shape: f32[2,16,2048], index: 0, kind: input, shape index: {}]
  %s1 = inlined_call_operand.vmem [shape: f32[2048,16], index: 1, kind: input, shape index: {}]
  %s2 = inlined_call_operand.vmem [shape: f32[1,16], index: 2, kind: input, shape index: {}]
  %s3 = inlined_call_operand.hbm [shape: f32[2,16], index: 3, kind: output, shape index: {0}]
  %s4 = inlined_call_operand.hbm [shape: f32[2,2048], index: 4, kind: output, shape index: {1}]
  %5 = xla_tuple %s3, %s4
  %s6 = sld [smem:[#allocation0]]
  $region30: #{tpu_custom_call.1} parent=0
    _
  %s8 = ssub.s32 1, %s6
  %s9 = scalar_select 0, %s8, %s6
  $region1: #{tpu_custom_call.1} parent=0
    #allocation2 [shape = 'u8[1024]{0}', space=vmem, size = 0x400, scoped, tag = 'output window, operand 0, single buffered']
    #allocation3 [shape = 's32[1]{0}', space=sflag, size = 0x4, scoped, tag = 'scoped memory for tpu_custom_call.1']
    #allocation4 [shape = 'u8[16384]{0}', space=vmem, size = 0x4000, scoped, tag = 'output window, operand 1, single buffered']
    #allocation5 [shape = 's32[1]{0}', space=sflag, size = 0x4, scoped, tag = 'scoped memory for tpu_custom_call.1']
    %10 = vsyncpa [#allocation3], 0
    %11 = vsyncpa [#allocation5], 0
    // Predicated region
    $region2: #{tpu_custom_call.1} parent=1 // pred_check
      _
    $region3: #{tpu_custom_call.1} parent=1 // pred_check_branch
      %13 = sbr.rel (0) target = $region5
    $region4: #{tpu_custom_call.1} parent=1 // pred_region
      _
    $region5: #{tpu_custom_call.1} parent=1 // pred_fallthru
      _
    // Predicated region
    $region6: #{tpu_custom_call.1} parent=1 // pred_check
      _
    $region7: #{tpu_custom_call.1} parent=1 // pred_check_branch
      %15 = sbr.rel (0) target = $region9
    $region8: #{tpu_custom_call.1} parent=1 // pred_region
      _
    $region9: #{tpu_custom_call.1} parent=1 // pred_fallthru
      _
    // Predicated region
    $region10: #{tpu_custom_call.1} parent=1 // pred_check
      _
    $region11: #{tpu_custom_call.1} parent=1 // pred_check_branch
      %17 = sbr.rel (0) target = $region13
    $region12: #{tpu_custom_call.1} parent=1 // pred_region
      _
    $region13: #{tpu_custom_call.1} parent=1 // pred_fallthru
      _
    %v18 = vld [vmem:[%s0] sm:$0xff]
    %v19 = vld [vmem:[%s0 + $0x8] sm:$0xff]
    %v20 = vld [vmem:[%s0 + $0x10] sm:$0xff]
    %v21 = vld [vmem:[%s0 + $0x18] sm:$0xff]
    %v22 = vld [vmem:[%s0 + $0x20] sm:$0xff]
    %v23 = vld [vmem:[%s0 + $0x28] sm:$0xff]
    %v24 = vld [vmem:[%s0 + $0x30] sm:$0xff]
    %v25 = vld [vmem:[%s0 + $0x38] sm:$0xff]
    %v26 = vld [vmem:[%s0 + $0x40] sm:$0xff]
    %v27 = vld [vmem:[%s0 + $0x48] sm:$0xff]
    %v28 = vld [vmem:[%s0 + $0x50] sm:$0xff]
    %v29 = vld [vmem:[%s0 + $0x58] sm:$0xff]
    %v30 = vld [vmem:[%s0 + $0x60] sm:$0xff]
    %v31 = vld [vmem:[%s0 + $0x68] sm:$0xff]
    %v32 = vld [vmem:[%s0 + $0x70] sm:$0xff]
    %v33 = vld [vmem:[%s0 + $0x78] sm:$0xff]
    %v34 = vld [vmem:[%s0 + $0x80] sm:$0xff]
    %v35 = vld [vmem:[%s0 + $0x88] sm:$0xff]
    %v36 = vld [vmem:[%s0 + $0x90] sm:$0xff]
    %v37 = vld [vmem:[%s0 + $0x98] sm:$0xff]
    %v38 = vld [vmem:[%s0 + $0xa0] sm:$0xff]
    %v39 = vld [vmem:[%s0 + $0xa8] sm:$0xff]
    %v40 = vld [vmem:[%s0 + $0xb0] sm:$0xff]
    %v41 = vld [vmem:[%s0 + $0xb8] sm:$0xff]
    %v42 = vld [vmem:[%s0 + $0xc0] sm:$0xff]
    %v43 = vld [vmem:[%s0 + $0xc8] sm:$0xff]
    %v44 = vld [vmem:[%s0 + $0xd0] sm:$0xff]
    %v45 = vld [vmem:[%s0 + $0xd8] sm:$0xff]
    %v46 = vld [vmem:[%s0 + $0xe0] sm:$0xff]
    %v47 = vld [vmem:[%s0 + $0xe8] sm:$0xff]
    %v48 = vld [vmem:[%s0 + $0xf0] sm:$0xff]
    %v49 = vld [vmem:[%s0 + $0xf8] sm:$0xff]
    %v50 = vld [vmem:[%s0 + $0x100] sm:$0xff]
    %v51 = vld [vmem:[%s0 + $0x108] sm:$0xff]
    %v52 = vld [vmem:[%s0 + $0x110] sm:$0xff]
    %v53 = vld [vmem:[%s0 + $0x118] sm:$0xff]
    %v54 = vld [vmem:[%s0 + $0x120] sm:$0xff]
    %v55 = vld [vmem:[%s0 + $0x128] sm:$0xff]
    %v56 = vld [vmem:[%s0 + $0x130] sm:$0xff]
    %v57 = vld [vmem:[%s0 + $0x138] sm:$0xff]
    %v58 = vld [vmem:[%s0 + $0x140] sm:$0xff]
    %v59 = vld [vmem:[%s0 + $0x148] sm:$0xff]
    %v60 = vld [vmem:[%s0 + $0x150] sm:$0xff]
    %v61 = vld [vmem:[%s0 + $0x158] sm:$0xff]
    %v62 = vld [vmem:[%s0 + $0x160] sm:$0xff]
    %v63 = vld [vmem:[%s0 + $0x168] sm:$0xff]
    %v64 = vld [vmem:[%s0 + $0x170] sm:$0xff]
    %v65 = vld [vmem:[%s0 + $0x178] sm:$0xff]
    %v66 = vld [vmem:[%s0 + $0x180] sm:$0xff]
    %v67 = vld [vmem:[%s0 + $0x188] sm:$0xff]
    %v68 = vld [vmem:[%s0 + $0x190] sm:$0xff]
    %v69 = vld [vmem:[%s0 + $0x198] sm:$0xff]
    %v70 = vld [vmem:[%s0 + $0x1a0] sm:$0xff]
    %v71 = vld [vmem:[%s0 + $0x1a8] sm:$0xff]
    %v72 = vld [vmem:[%s0 + $0x1b0] sm:$0xff]
    %v73 = vld [vmem:[%s0 + $0x1b8] sm:$0xff]
    %v74 = vld [vmem:[%s0 + $0x1c0] sm:$0xff]
    %v75 = vld [vmem:[%s0 + $0x1c8] sm:$0xff]
    %v76 = vld [vmem:[%s0 + $0x1d0] sm:$0xff]
    %v77 = vld [vmem:[%s0 + $0x1d8] sm:$0xff]
    %v78 = vld [vmem:[%s0 + $0x1e0] sm:$0xff]
    %v79 = vld [vmem:[%s0 + $0x1e8] sm:$0xff]
    %v80 = vld [vmem:[%s0 + $0x1f0] sm:$0xff]
    %v81 = vld [vmem:[%s0 + $0x1f8] sm:$0xff]
    %v82 = vadd.f32 %v18, %v34
    %v83 = vrot.slane %v82, 4
    %v84 = vadd.f32 %v82, %v83
    %v85 = vrot.slane %v84, 2
    %v86 = vadd.f32 %v84, %v85
    %v87 = vrot.slane %v86, 1
    %v88 = vadd.f32 %v86, %v87
    %v89 = vadd.f32 %v19, %v35
    %v90 = vrot.slane %v89, 4
    %v91 = vadd.f32 %v89, %v90
    %v92 = vrot.slane %v91, 2
    %v93 = vadd.f32 %v91, %v92
    %v94 = vrot.slane %v93, 1
    %v95 = vadd.f32 %v93, %v94
    %v96 = vadd.f32 %v20, %v36
    %v97 = vrot.slane %v96, 4
    %v98 = vadd.f32 %v96, %v97
    %v99 = vrot.slane %v98, 2
    %v100 = vadd.f32 %v98, %v99
    %v101 = vrot.slane %v100, 1
    %v102 = vadd.f32 %v100, %v101
    %v103 = vadd.f32 %v21, %v37
    %v104 = vrot.slane %v103, 4
    %v105 = vadd.f32 %v103, %v104
    %v106 = vrot.slane %v105, 2
    %v107 = vadd.f32 %v105, %v106
    %v108 = vrot.slane %v107, 1
    %v109 = vadd.f32 %v107, %v108
    %v110 = vadd.f32 %v22, %v38
    %v111 = vrot.slane %v110, 4
    %v112 = vadd.f32 %v110, %v111
    %v113 = vrot.slane %v112, 2
    %v114 = vadd.f32 %v112, %v113
    %v115 = vrot.slane %v114, 1
    %v116 = vadd.f32 %v114, %v115
    %v117 = vadd.f32 %v23, %v39
    %v118 = vrot.slane %v117, 4
    %v119 = vadd.f32 %v117, %v118
    %v120 = vrot.slane %v119, 2
    %v121 = vadd.f32 %v119, %v120
    %v122 = vrot.slane %v121, 1
    %v123 = vadd.f32 %v121, %v122
    %v124 = vadd.f32 %v24, %v40
    %v125 = vrot.slane %v124, 4
    %v126 = vadd.f32 %v124, %v125
    %v127 = vrot.slane %v126, 2
    %v128 = vadd.f32 %v126, %v127
    %v129 = vrot.slane %v128, 1
    %v130 = vadd.f32 %v128, %v129
    %v131 = vadd.f32 %v25, %v41
    %v132 = vrot.slane %v131, 4
    %v133 = vadd.f32 %v131, %v132
    %v134 = vrot.slane %v133, 2
    %v135 = vadd.f32 %v133, %v134
    %v136 = vrot.slane %v135, 1
    %v137 = vadd.f32 %v135, %v136
    %v138 = vadd.f32 %v26, %v42
    %v139 = vrot.slane %v138, 4
    %v140 = vadd.f32 %v138, %v139
    %v141 = vrot.slane %v140, 2
    %v142 = vadd.f32 %v140, %v141
    %v143 = vrot.slane %v142, 1
    %v144 = vadd.f32 %v142, %v143
    %v145 = vadd.f32 %v27, %v43
    %v146 = vrot.slane %v145, 4
    %v147 = vadd.f32 %v145, %v146
    %v148 = vrot.slane %v147, 2
    %v149 = vadd.f32 %v147, %v148
    %v150 = vrot.slane %v149, 1
    %v151 = vadd.f32 %v149, %v150
    %v152 = vadd.f32 %v28, %v44
    %v153 = vrot.slane %v152, 4
    %v154 = vadd.f32 %v152, %v153
    %v155 = vrot.slane %v154, 2
    %v156 = vadd.f32 %v154, %v155
    %v157 = vrot.slane %v156, 1
    %v158 = vadd.f32 %v156, %v157
    %v159 = vadd.f32 %v29, %v45
    %v160 = vrot.slane %v159, 4
    %v161 = vadd.f32 %v159, %v160
    %v162 = vrot.slane %v161, 2
    %v163 = vadd.f32 %v161, %v162
    %v164 = vrot.slane %v163, 1
    %v165 = vadd.f32 %v163, %v164
    %v166 = vadd.f32 %v30, %v46
    %v167 = vrot.slane %v166, 4
    %v168 = vadd.f32 %v166, %v167
    %v169 = vrot.slane %v168, 2
    %v170 = vadd.f32 %v168, %v169
    %v171 = vrot.slane %v170, 1
    %v172 = vadd.f32 %v170, %v171
    %v173 = vadd.f32 %v31, %v47
    %v174 = vrot.slane %v173, 4
    %v175 = vadd.f32 %v173, %v174
    %v176 = vrot.slane %v175, 2
    %v177 = vadd.f32 %v175, %v176
    %v178 = vrot.slane %v177, 1
    %v179 = vadd.f32 %v177, %v178
    %v180 = vadd.f32 %v32, %v48
    %v181 = vrot.slane %v180, 4
    %v182 = vadd.f32 %v180, %v181
    %v183 = vrot.slane %v182, 2
    %v184 = vadd.f32 %v182, %v183
    %v185 = vrot.slane %v184, 1
    %v186 = vadd.f32 %v184, %v185
    %v187 = vadd.f32 %v33, %v49
    %v188 = vrot.slane %v187, 4
    %v189 = vadd.f32 %v187, %v188
    %v190 = vrot.slane %v189, 2
    %v191 = vadd.f32 %v189, %v190
    %v192 = vrot.slane %v191, 1
    %v193 = vadd.f32 %v191, %v192
    %v194 = vadd.f32 %v50, %v66
    %v195 = vrot.slane %v194, 4
    %v196 = vadd.f32 %v194, %v195
    %v197 = vrot.slane %v196, 2
    %v198 = vadd.f32 %v196, %v197
    %v199 = vrot.slane %v198, 1
    %v200 = vadd.f32 %v198, %v199
    %v201 = vadd.f32 %v51, %v67
    %v202 = vrot.slane %v201, 4
    %v203 = vadd.f32 %v201, %v202
    %v204 = vrot.slane %v203, 2
    %v205 = vadd.f32 %v203, %v204
    %v206 = vrot.slane %v205, 1
    %v207 = vadd.f32 %v205, %v206
    %v208 = vadd.f32 %v52, %v68
    %v209 = vrot.slane %v208, 4
    %v210 = vadd.f32 %v208, %v209
    %v211 = vrot.slane %v210, 2
    %v212 = vadd.f32 %v210, %v211
    %v213 = vrot.slane %v212, 1
    %v214 = vadd.f32 %v212, %v213
    %v215 = vadd.f32 %v53, %v69
    %v216 = vrot.slane %v215, 4
    %v217 = vadd.f32 %v215, %v216
    %v218 = vrot.slane %v217, 2
    %v219 = vadd.f32 %v217, %v218
    %v220 = vrot.slane %v219, 1
    %v221 = vadd.f32 %v219, %v220
    %v222 = vadd.f32 %v54, %v70
    %v223 = vrot.slane %v222, 4
    %v224 = vadd.f32 %v222, %v223
    %v225 = vrot.slane %v224, 2
    %v226 = vadd.f32 %v224, %v225
    %v227 = vrot.slane %v226, 1
    %v228 = vadd.f32 %v226, %v227
    %v229 = vadd.f32 %v55, %v71
    %v230 = vrot.slane %v229, 4
    %v231 = vadd.f32 %v229, %v230
    %v232 = vrot.slane %v231, 2
    %v233 = vadd.f32 %v231, %v232
    %v234 = vrot.slane %v233, 1
    %v235 = vadd.f32 %v233, %v234
    %v236 = vadd.f32 %v56, %v72
    %v237 = vrot.slane %v236, 4
    %v238 = vadd.f32 %v236, %v237
    %v239 = vrot.slane %v238, 2
    %v240 = vadd.f32 %v238, %v239
    %v241 = vrot.slane %v240, 1
    %v242 = vadd.f32 %v240, %v241
    %v243 = vadd.f32 %v57, %v73
    %v244 = vrot.slane %v243, 4
    %v245 = vadd.f32 %v243, %v244
    %v246 = vrot.slane %v245, 2
    %v247 = vadd.f32 %v245, %v246
    %v248 = vrot.slane %v247, 1
    %v249 = vadd.f32 %v247, %v248
    %v250 = vadd.f32 %v58, %v74
    %v251 = vrot.slane %v250, 4
    %v252 = vadd.f32 %v250, %v251
    %v253 = vrot.slane %v252, 2
    %v254 = vadd.f32 %v252, %v253
    %v255 = vrot.slane %v254, 1
    %v256 = vadd.f32 %v254, %v255
    %v257 = vadd.f32 %v59, %v75
    %v258 = vrot.slane %v257, 4
    %v259 = vadd.f32 %v257, %v258
    %v260 = vrot.slane %v259, 2
    %v261 = vadd.f32 %v259, %v260
    %v262 = vrot.slane %v261, 1
    %v263 = vadd.f32 %v261, %v262
    %v264 = vadd.f32 %v60, %v76
    %v265 = vrot.slane %v264, 4
    %v266 = vadd.f32 %v264, %v265
    %v267 = vrot.slane %v266, 2
    %v268 = vadd.f32 %v266, %v267
    %v269 = vrot.slane %v268, 1
    %v270 = vadd.f32 %v268, %v269
    %v271 = vadd.f32 %v61, %v77
    %v272 = vrot.slane %v271, 4
    %v273 = vadd.f32 %v271, %v272
    %v274 = vrot.slane %v273, 2
    %v275 = vadd.f32 %v273, %v274
    %v276 = vrot.slane %v275, 1
    %v277 = vadd.f32 %v275, %v276
    %v278 = vadd.f32 %v62, %v78
    %v279 = vrot.slane %v278, 4
    %v280 = vadd.f32 %v278, %v279
    %v281 = vrot.slane %v280, 2
    %v282 = vadd.f32 %v280, %v281
    %v283 = vrot.slane %v282, 1
    %v284 = vadd.f32 %v282, %v283
    %v285 = vadd.f32 %v63, %v79
    %v286 = vrot.slane %v285, 4
    %v287 = vadd.f32 %v285, %v286
    %v288 = vrot.slane %v287, 2
    %v289 = vadd.f32 %v287, %v288
    %v290 = vrot.slane %v289, 1
    %v291 = vadd.f32 %v289, %v290
    %v292 = vadd.f32 %v64, %v80
    %v293 = vrot.slane %v292, 4
    %v294 = vadd.f32 %v292, %v293
    %v295 = vrot.slane %v294, 2
    %v296 = vadd.f32 %v294, %v295
    %v297 = vrot.slane %v296, 1
    %v298 = vadd.f32 %v296, %v297
    %v299 = vadd.f32 %v65, %v81
    %v300 = vrot.slane %v299, 4
    %v301 = vadd.f32 %v299, %v300
    %v302 = vrot.slane %v301, 2
    %v303 = vadd.f32 %v301, %v302
    %v304 = vrot.slane %v303, 1
    %v305 = vadd.f32 %v303, %v304
    %v306 = vmul.f32 %v88, 0.0625
    %v307 = vmul.f32 %v95, 0.0625
    %v308 = vmul.f32 %v102, 0.0625
    %v309 = vmul.f32 %v109, 0.0625
    %v310 = vmul.f32 %v116, 0.0625
    %v311 = vmul.f32 %v123, 0.0625
    %v312 = vmul.f32 %v130, 0.0625
    %v313 = vmul.f32 %v137, 0.0625
    %v314 = vmul.f32 %v144, 0.0625
    %v315 = vmul.f32 %v151, 0.0625
    %v316 = vmul.f32 %v158, 0.0625
    %v317 = vmul.f32 %v165, 0.0625
    %v318 = vmul.f32 %v172, 0.0625
    %v319 = vmul.f32 %v179, 0.0625
    %v320 = vmul.f32 %v186, 0.0625
    %v321 = vmul.f32 %v193, 0.0625
    %v322 = vmul.f32 %v200, 0.0625
    %v323 = vmul.f32 %v207, 0.0625
    %v324 = vmul.f32 %v214, 0.0625
    %v325 = vmul.f32 %v221, 0.0625
    %v326 = vmul.f32 %v228, 0.0625
    %v327 = vmul.f32 %v235, 0.0625
    %v328 = vmul.f32 %v242, 0.0625
    %v329 = vmul.f32 %v249, 0.0625
    %v330 = vmul.f32 %v256, 0.0625
    %v331 = vmul.f32 %v263, 0.0625
    %v332 = vmul.f32 %v270, 0.0625
    %v333 = vmul.f32 %v277, 0.0625
    %v334 = vmul.f32 %v284, 0.0625
    %v335 = vmul.f32 %v291, 0.0625
    %v336 = vmul.f32 %v298, 0.0625
    %v337 = vmul.f32 %v305, 0.0625
    %v370 = vcombine.low %v306, %v307
    %v371 = vcombine.low %v308, %v309
    %v373 = vunpack.c.l.s4 1983009808
    %v374 = vunpack.c.0.s8 %v373
    %v375 = vlaneseq
    %v376 = vshrl.u32 %v375, 7
    %v377 = vsub.s32 %v374, %v376
    %v378 = vrot.slane %v370, %v377
    %v380 = vunpack.c.l.s4 1983009808
    %v381 = vunpack.c.0.s8 %v380
    %v382 = vlaneseq
    %v383 = vshrl.u32 %v382, 7
    %v384 = vsub.s32 %v381, %v383
    %v385 = vrot.slane %v371, %v384
    %v386 = vcombine.low %v378, %v385
    %v387 = vcombine.low %v310, %v311
    %v388 = vcombine.low %v312, %v313
    %v390 = vunpack.c.l.s4 1983009808
    %v391 = vunpack.c.0.s8 %v390
    %v392 = vlaneseq
    %v393 = vshrl.u32 %v392, 7
    %v394 = vsub.s32 %v391, %v393
    %v395 = vrot.slane %v387, %v394
    %v397 = vunpack.c.l.s4 1983009808
    %v398 = vunpack.c.0.s8 %v397
    %v399 = vlaneseq
    %v400 = vshrl.u32 %v399, 7
    %v401 = vsub.s32 %v398, %v400
    %v402 = vrot.slane %v388, %v401
    %v403 = vcombine.low %v395, %v402
    %v404 = vcombine.low %v314, %v315
    %v405 = vcombine.low %v316, %v317
    %v407 = vunpack.c.l.s4 1983009808
    %v408 = vunpack.c.0.s8 %v407
    %v409 = vlaneseq
    %v410 = vshrl.u32 %v409, 7
    %v411 = vsub.s32 %v408, %v410
    %v412 = vrot.slane %v404, %v411
    %v414 = vunpack.c.l.s4 1983009808
    %v415 = vunpack.c.0.s8 %v414
    %v416 = vlaneseq
    %v417 = vshrl.u32 %v416, 7
    %v418 = vsub.s32 %v415, %v417
    %v419 = vrot.slane %v405, %v418
    %v420 = vcombine.low %v412, %v419
    %v421 = vcombine.low %v318, %v319
    %v422 = vcombine.low %v320, %v321
    %v424 = vunpack.c.l.s4 1983009808
    %v425 = vunpack.c.0.s8 %v424
    %v426 = vlaneseq
    %v427 = vshrl.u32 %v426, 7
    %v428 = vsub.s32 %v425, %v427
    %v429 = vrot.slane %v421, %v428
    %v431 = vunpack.c.l.s4 1983009808
    %v432 = vunpack.c.0.s8 %v431
    %v433 = vlaneseq
    %v434 = vshrl.u32 %v433, 7
    %v435 = vsub.s32 %v432, %v434
    %v436 = vrot.slane %v422, %v435
    %v437 = vcombine.low %v429, %v436
    %v438 = vcombine.low %v322, %v323
    %v439 = vcombine.low %v324, %v325
    %v441 = vunpack.c.l.s4 1983009808
    %v442 = vunpack.c.0.s8 %v441
    %v443 = vlaneseq
    %v444 = vshrl.u32 %v443, 7
    %v445 = vsub.s32 %v442, %v444
    %v446 = vrot.slane %v438, %v445
    %v448 = vunpack.c.l.s4 1983009808
    %v449 = vunpack.c.0.s8 %v448
    %v450 = vlaneseq
    %v451 = vshrl.u32 %v450, 7
    %v452 = vsub.s32 %v449, %v451
    %v453 = vrot.slane %v439, %v452
    %v454 = vcombine.low %v446, %v453
    %v455 = vcombine.low %v326, %v327
    %v456 = vcombine.low %v328, %v329
    %v458 = vunpack.c.l.s4 1983009808
    %v459 = vunpack.c.0.s8 %v458
    %v460 = vlaneseq
    %v461 = vshrl.u32 %v460, 7
    %v462 = vsub.s32 %v459, %v461
    %v463 = vrot.slane %v455, %v462
    %v465 = vunpack.c.l.s4 1983009808
    %v466 = vunpack.c.0.s8 %v465
    %v467 = vlaneseq
    %v468 = vshrl.u32 %v467, 7
    %v469 = vsub.s32 %v466, %v468
    %v470 = vrot.slane %v456, %v469
    %v471 = vcombine.low %v463, %v470
    %v472 = vcombine.low %v330, %v331
    %v473 = vcombine.low %v332, %v333
    %v475 = vunpack.c.l.s4 1983009808
    %v476 = vunpack.c.0.s8 %v475
    %v477 = vlaneseq
    %v478 = vshrl.u32 %v477, 7
    %v479 = vsub.s32 %v476, %v478
    %v480 = vrot.slane %v472, %v479
    %v482 = vunpack.c.l.s4 1983009808
    %v483 = vunpack.c.0.s8 %v482
    %v484 = vlaneseq
    %v485 = vshrl.u32 %v484, 7
    %v486 = vsub.s32 %v483, %v485
    %v487 = vrot.slane %v473, %v486
    %v488 = vcombine.low %v480, %v487
    %v489 = vcombine.low %v334, %v335
    %v490 = vcombine.low %v336, %v337
    %v492 = vunpack.c.l.s4 1983009808
    %v493 = vunpack.c.0.s8 %v492
    %v494 = vlaneseq
    %v495 = vshrl.u32 %v494, 7
    %v496 = vsub.s32 %v493, %v495
    %v497 = vrot.slane %v489, %v496
    %v499 = vunpack.c.l.s4 1983009808
    %v500 = vunpack.c.0.s8 %v499
    %v501 = vlaneseq
    %v502 = vshrl.u32 %v501, 7
    %v503 = vsub.s32 %v500, %v502
    %v504 = vrot.slane %v490, %v503
    %v505 = vcombine.low %v497, %v504
    %vm506 = vcmask 1044484
    %v507 = vsel %vm506, %v386, %v386
    %vm508 = vcmask 1046534
    %v509 = vsel %vm508, %v386, %v507
    %v510 = vrot.slane %v454, 7
    %vm511 = vcmask 1041409
    %v512 = vsel %vm511, %v510, %v509
    %vm513 = vcmask 1043459
    %v514 = vsel %vm513, %v510, %v512
    %vm515 = vcmask 1045509
    %v516 = vsel %vm515, %v510, %v514
    %vm517 = vcmask 1047559
    %v518 = vsel %vm517, %v510, %v516
    %v519 = vsel %vm506, %v403, %v403
    %v520 = vsel %vm508, %v403, %v519
    %v521 = vrot.slane %v471, 7
    %v522 = vsel %vm511, %v521, %v520
    %v523 = vsel %vm513, %v521, %v522
    %v524 = vsel %vm515, %v521, %v523
    %v525 = vsel %vm517, %v521, %v524
    %v526 = vsel %vm506, %v420, %v420
    %v527 = vsel %vm508, %v420, %v526
    %v528 = vrot.slane %v488, 7
    %v529 = vsel %vm511, %v528, %v527
    %v530 = vsel %vm513, %v528, %v529
    %v531 = vsel %vm515, %v528, %v530
    %v532 = vsel %vm517, %v528, %v531
    %v533 = vsel %vm506, %v437, %v437
    %v534 = vsel %vm508, %v437, %v533
    %v535 = vrot.slane %v505, 7
    %v536 = vsel %vm511, %v535, %v534
    %v537 = vsel %vm513, %v535, %v536
    %v538 = vsel %vm515, %v535, %v537
    %v539 = vsel %vm517, %v535, %v538
    %544 = vst [vmem:[#allocation4] sm:$0xff] %v518
    %545 = vst [vmem:[#allocation4 + $0x8] sm:$0xff] %v525
    %546 = vst [vmem:[#allocation4 + $0x10] sm:$0xff] %v532
    %547 = vst [vmem:[#allocation4 + $0x18] sm:$0xff] %v539
    %v548 = vld [vmem:[%s1] sm:$0xff]
    %v549 = vld [vmem:[%s1 + $0x8] sm:$0xff]
    %v550 = vld [vmem:[%s1 + $0x10] sm:$0xff]
    %v551 = vld [vmem:[%s1 + $0x18] sm:$0xff]
    %v552 = vld [vmem:[%s1 + $0x20] sm:$0xff]
    %v553 = vld [vmem:[%s1 + $0x28] sm:$0xff]
    %v554 = vld [vmem:[%s1 + $0x30] sm:$0xff]
    %v555 = vld [vmem:[%s1 + $0x38] sm:$0xff]
    %v556 = vld [vmem:[%s1 + $0x40] sm:$0xff]
    %v557 = vld [vmem:[%s1 + $0x48] sm:$0xff]
    %v558 = vld [vmem:[%s1 + $0x50] sm:$0xff]
    %v559 = vld [vmem:[%s1 + $0x58] sm:$0xff]
    %v560 = vld [vmem:[%s1 + $0x60] sm:$0xff]
    %v561 = vld [vmem:[%s1 + $0x68] sm:$0xff]
    %v562 = vld [vmem:[%s1 + $0x70] sm:$0xff]
    %v563 = vld [vmem:[%s1 + $0x78] sm:$0xff]
    %v564 = vld [vmem:[%s1 + $0x80] sm:$0xff]
    %v565 = vld [vmem:[%s1 + $0x88] sm:$0xff]
    %v566 = vld [vmem:[%s1 + $0x90] sm:$0xff]
    %v567 = vld [vmem:[%s1 + $0x98] sm:$0xff]
    %v568 = vld [vmem:[%s1 + $0xa0] sm:$0xff]
    %v569 = vld [vmem:[%s1 + $0xa8] sm:$0xff]
    %v570 = vld [vmem:[%s1 + $0xb0] sm:$0xff]
    %v571 = vld [vmem:[%s1 + $0xb8] sm:$0xff]
    %v572 = vld [vmem:[%s1 + $0xc0] sm:$0xff]
    %v573 = vld [vmem:[%s1 + $0xc8] sm:$0xff]
    %v574 = vld [vmem:[%s1 + $0xd0] sm:$0xff]
    %v575 = vld [vmem:[%s1 + $0xd8] sm:$0xff]
    %v576 = vld [vmem:[%s1 + $0xe0] sm:$0xff]
    %v577 = vld [vmem:[%s1 + $0xe8] sm:$0xff]
    %v578 = vld [vmem:[%s1 + $0xf0] sm:$0xff]
    %v579 = vld [vmem:[%s1 + $0xf8] sm:$0xff]
    %v580 = vld [vmem:[%s1 + $0x100] sm:$0xff]
    %v581 = vld [vmem:[%s1 + $0x108] sm:$0xff]
    %v582 = vld [vmem:[%s1 + $0x110] sm:$0xff]
    %v583 = vld [vmem:[%s1 + $0x118] sm:$0xff]
    %v584 = vld [vmem:[%s1 + $0x120] sm:$0xff]
    %v585 = vld [vmem:[%s1 + $0x128] sm:$0xff]
    %v586 = vld [vmem:[%s1 + $0x130] sm:$0xff]
    %v587 = vld [vmem:[%s1 + $0x138] sm:$0xff]
    %v588 = vld [vmem:[%s1 + $0x140] sm:$0xff]
    %v589 = vld [vmem:[%s1 + $0x148] sm:$0xff]
    %v590 = vld [vmem:[%s1 + $0x150] sm:$0xff]
    %v591 = vld [vmem:[%s1 + $0x158] sm:$0xff]
    %v592 = vld [vmem:[%s1 + $0x160] sm:$0xff]
    %v593 = vld [vmem:[%s1 + $0x168] sm:$0xff]
    %v594 = vld [vmem:[%s1 + $0x170] sm:$0xff]
    %v595 = vld [vmem:[%s1 + $0x178] sm:$0xff]
    %v596 = vld [vmem:[%s1 + $0x180] sm:$0xff]
    %v597 = vld [vmem:[%s1 + $0x188] sm:$0xff]
    %v598 = vld [vmem:[%s1 + $0x190] sm:$0xff]
    %v599 = vld [vmem:[%s1 + $0x198] sm:$0xff]
    %v600 = vld [vmem:[%s1 + $0x1a0] sm:$0xff]
    %v601 = vld [vmem:[%s1 + $0x1a8] sm:$0xff]
    %v602 = vld [vmem:[%s1 + $0x1b0] sm:$0xff]
    %v603 = vld [vmem:[%s1 + $0x1b8] sm:$0xff]
    %v604 = vld [vmem:[%s1 + $0x1c0] sm:$0xff]
    %v605 = vld [vmem:[%s1 + $0x1c8] sm:$0xff]
    %v606 = vld [vmem:[%s1 + $0x1d0] sm:$0xff]
    %v607 = vld [vmem:[%s1 + $0x1d8] sm:$0xff]
    %v608 = vld [vmem:[%s1 + $0x1e0] sm:$0xff]
    %v609 = vld [vmem:[%s1 + $0x1e8] sm:$0xff]
    %v610 = vld [vmem:[%s1 + $0x1f0] sm:$0xff]
    %v611 = vld [vmem:[%s1 + $0x1f8] sm:$0xff]
    %v612 = vld [vmem:[%s1 + $0x200] sm:$0xff]
    %v613 = vld [vmem:[%s1 + $0x208] sm:$0xff]
    %v614 = vld [vmem:[%s1 + $0x210] sm:$0xff]
    %v615 = vld [vmem:[%s1 + $0x218] sm:$0xff]
    %v616 = vld [vmem:[%s1 + $0x220] sm:$0xff]
    %v617 = vld [vmem:[%s1 + $0x228] sm:$0xff]
    %v618 = vld [vmem:[%s1 + $0x230] sm:$0xff]
    %v619 = vld [vmem:[%s1 + $0x238] sm:$0xff]
    %v620 = vld [vmem:[%s1 + $0x240] sm:$0xff]
    %v621 = vld [vmem:[%s1 + $0x248] sm:$0xff]
    %v622 = vld [vmem:[%s1 + $0x250] sm:$0xff]
    %v623 = vld [vmem:[%s1 + $0x258] sm:$0xff]
    %v624 = vld [vmem:[%s1 + $0x260] sm:$0xff]
    %v625 = vld [vmem:[%s1 + $0x268] sm:$0xff]
    %v626 = vld [vmem:[%s1 + $0x270] sm:$0xff]
    %v627 = vld [vmem:[%s1 + $0x278] sm:$0xff]
    %v628 = vld [vmem:[%s1 + $0x280] sm:$0xff]
    %v629 = vld [vmem:[%s1 + $0x288] sm:$0xff]
    %v630 = vld [vmem:[%s1 + $0x290] sm:$0xff]
    %v631 = vld [vmem:[%s1 + $0x298] sm:$0xff]
    %v632 = vld [vmem:[%s1 + $0x2a0] sm:$0xff]
    %v633 = vld [vmem:[%s1 + $0x2a8] sm:$0xff]
    %v634 = vld [vmem:[%s1 + $0x2b0] sm:$0xff]
    %v635 = vld [vmem:[%s1 + $0x2b8] sm:$0xff]
    %v636 = vld [vmem:[%s1 + $0x2c0] sm:$0xff]
    %v637 = vld [vmem:[%s1 + $0x2c8] sm:$0xff]
    %v638 = vld [vmem:[%s1 + $0x2d0] sm:$0xff]
    %v639 = vld [vmem:[%s1 + $0x2d8] sm:$0xff]
    %v640 = vld [vmem:[%s1 + $0x2e0] sm:$0xff]
    %v641 = vld [vmem:[%s1 + $0x2e8] sm:$0xff]
    %v642 = vld [vmem:[%s1 + $0x2f0] sm:$0xff]
    %v643 = vld [vmem:[%s1 + $0x2f8] sm:$0xff]
    %v644 = vld [vmem:[%s1 + $0x300] sm:$0xff]
    %v645 = vld [vmem:[%s1 + $0x308] sm:$0xff]
    %v646 = vld [vmem:[%s1 + $0x310] sm:$0xff]
    %v647 = vld [vmem:[%s1 + $0x318] sm:$0xff]
    %v648 = vld [vmem:[%s1 + $0x320] sm:$0xff]
    %v649 = vld [vmem:[%s1 + $0x328] sm:$0xff]
    %v650 = vld [vmem:[%s1 + $0x330] sm:$0xff]
    %v651 = vld [vmem:[%s1 + $0x338] sm:$0xff]
    %v652 = vld [vmem:[%s1 + $0x340] sm:$0xff]
    %v653 = vld [vmem:[%s1 + $0x348] sm:$0xff]
    %v654 = vld [vmem:[%s1 + $0x350] sm:$0xff]
    %v655 = vld [vmem:[%s1 + $0x358] sm:$0xff]
    %v656 = vld [vmem:[%s1 + $0x360] sm:$0xff]
    %v657 = vld [vmem:[%s1 + $0x368] sm:$0xff]
    %v658 = vld [vmem:[%s1 + $0x370] sm:$0xff]
    %v659 = vld [vmem:[%s1 + $0x378] sm:$0xff]
    %v660 = vld [vmem:[%s1 + $0x380] sm:$0xff]
    %v661 = vld [vmem:[%s1 + $0x388] sm:$0xff]
    %v662 = vld [vmem:[%s1 + $0x390] sm:$0xff]
    %v663 = vld [vmem:[%s1 + $0x398] sm:$0xff]
    %v664 = vld [vmem:[%s1 + $0x3a0] sm:$0xff]
    %v665 = vld [vmem:[%s1 + $0x3a8] sm:$0xff]
    %v666 = vld [vmem:[%s1 + $0x3b0] sm:$0xff]
    %v667 = vld [vmem:[%s1 + $0x3b8] sm:$0xff]
    %v668 = vld [vmem:[%s1 + $0x3c0] sm:$0xff]
    %v669 = vld [vmem:[%s1 + $0x3c8] sm:$0xff]
    %v670 = vld [vmem:[%s1 + $0x3d0] sm:$0xff]
    %v671 = vld [vmem:[%s1 + $0x3d8] sm:$0xff]
    %v672 = vld [vmem:[%s1 + $0x3e0] sm:$0xff]
    %v673 = vld [vmem:[%s1 + $0x3e8] sm:$0xff]
    %v674 = vld [vmem:[%s1 + $0x3f0] sm:$0xff]
    %v675 = vld [vmem:[%s1 + $0x3f8] sm:$0xff]
    %v676 = vld [vmem:[%s1 + $0x400] sm:$0xff]
    %v677 = vld [vmem:[%s1 + $0x408] sm:$0xff]
    %v678 = vld [vmem:[%s1 + $0x410] sm:$0xff]
    %v679 = vld [vmem:[%s1 + $0x418] sm:$0xff]
    %v680 = vld [vmem:[%s1 + $0x420] sm:$0xff]
    %v681 = vld [vmem:[%s1 + $0x428] sm:$0xff]
    %v682 = vld [vmem:[%s1 + $0x430] sm:$0xff]
    %v683 = vld [vmem:[%s1 + $0x438] sm:$0xff]
    %v684 = vld [vmem:[%s1 + $0x440] sm:$0xff]
    %v685 = vld [vmem:[%s1 + $0x448] sm:$0xff]
    %v686 = vld [vmem:[%s1 + $0x450] sm:$0xff]
    %v687 = vld [vmem:[%s1 + $0x458] sm:$0xff]
    %v688 = vld [vmem:[%s1 + $0x460] sm:$0xff]
    %v689 = vld [vmem:[%s1 + $0x468] sm:$0xff]
    %v690 = vld [vmem:[%s1 + $0x470] sm:$0xff]
    %v691 = vld [vmem:[%s1 + $0x478] sm:$0xff]
    %v692 = vld [vmem:[%s1 + $0x480] sm:$0xff]
    %v693 = vld [vmem:[%s1 + $0x488] sm:$0xff]
    %v694 = vld [vmem:[%s1 + $0x490] sm:$0xff]
    %v695 = vld [vmem:[%s1 + $0x498] sm:$0xff]
    %v696 = vld [vmem:[%s1 + $0x4a0] sm:$0xff]
    %v697 = vld [vmem:[%s1 + $0x4a8] sm:$0xff]
    %v698 = vld [vmem:[%s1 + $0x4b0] sm:$0xff]
    %v699 = vld [vmem:[%s1 + $0x4b8] sm:$0xff]
    %v700 = vld [vmem:[%s1 + $0x4c0] sm:$0xff]
    %v701 = vld [vmem:[%s1 + $0x4c8] sm:$0xff]
    %v702 = vld [vmem:[%s1 + $0x4d0] sm:$0xff]
    %v703 = vld [vmem:[%s1 + $0x4d8] sm:$0xff]
    %v704 = vld [vmem:[%s1 + $0x4e0] sm:$0xff]
    %v705 = vld [vmem:[%s1 + $0x4e8] sm:$0xff]
    %v706 = vld [vmem:[%s1 + $0x4f0] sm:$0xff]
    %v707 = vld [vmem:[%s1 + $0x4f8] sm:$0xff]
    %v708 = vld [vmem:[%s1 + $0x500] sm:$0xff]
    %v709 = vld [vmem:[%s1 + $0x508] sm:$0xff]
    %v710 = vld [vmem:[%s1 + $0x510] sm:$0xff]
    %v711 = vld [vmem:[%s1 + $0x518] sm:$0xff]
    %v712 = vld [vmem:[%s1 + $0x520] sm:$0xff]
    %v713 = vld [vmem:[%s1 + $0x528] sm:$0xff]
    %v714 = vld [vmem:[%s1 + $0x530] sm:$0xff]
    %v715 = vld [vmem:[%s1 + $0x538] sm:$0xff]
    %v716 = vld [vmem:[%s1 + $0x540] sm:$0xff]
    %v717 = vld [vmem:[%s1 + $0x548] sm:$0xff]
    %v718 = vld [vmem:[%s1 + $0x550] sm:$0xff]
    %v719 = vld [vmem:[%s1 + $0x558] sm:$0xff]
    %v720 = vld [vmem:[%s1 + $0x560] sm:$0xff]
    %v721 = vld [vmem:[%s1 + $0x568] sm:$0xff]
    %v722 = vld [vmem:[%s1 + $0x570] sm:$0xff]
    %v723 = vld [vmem:[%s1 + $0x578] sm:$0xff]
    %v724 = vld [vmem:[%s1 + $0x580] sm:$0xff]
    %v725 = vld [vmem:[%s1 + $0x588] sm:$0xff]
    %v726 = vld [vmem:[%s1 + $0x590] sm:$0xff]
    %v727 = vld [vmem:[%s1 + $0x598] sm:$0xff]
    %v728 = vld [vmem:[%s1 + $0x5a0] sm:$0xff]
    %v729 = vld [vmem:[%s1 + $0x5a8] sm:$0xff]
    %v730 = vld [vmem:[%s1 + $0x5b0] sm:$0xff]
    %v731 = vld [vmem:[%s1 + $0x5b8] sm:$0xff]
    %v732 = vld [vmem:[%s1 + $0x5c0] sm:$0xff]
    %v733 = vld [vmem:[%s1 + $0x5c8] sm:$0xff]
    %v734 = vld [vmem:[%s1 + $0x5d0] sm:$0xff]
    %v735 = vld [vmem:[%s1 + $0x5d8] sm:$0xff]
    %v736 = vld [vmem:[%s1 + $0x5e0] sm:$0xff]
    %v737 = vld [vmem:[%s1 + $0x5e8] sm:$0xff]
    %v738 = vld [vmem:[%s1 + $0x5f0] sm:$0xff]
    %v739 = vld [vmem:[%s1 + $0x5f8] sm:$0xff]
    %v740 = vld [vmem:[%s1 + $0x600] sm:$0xff]
    %v741 = vld [vmem:[%s1 + $0x608] sm:$0xff]
    %v742 = vld [vmem:[%s1 + $0x610] sm:$0xff]
    %v743 = vld [vmem:[%s1 + $0x618] sm:$0xff]
    %v744 = vld [vmem:[%s1 + $0x620] sm:$0xff]
    %v745 = vld [vmem:[%s1 + $0x628] sm:$0xff]
    %v746 = vld [vmem:[%s1 + $0x630] sm:$0xff]
    %v747 = vld [vmem:[%s1 + $0x638] sm:$0xff]
    %v748 = vld [vmem:[%s1 + $0x640] sm:$0xff]
    %v749 = vld [vmem:[%s1 + $0x648] sm:$0xff]
    %v750 = vld [vmem:[%s1 + $0x650] sm:$0xff]
    %v751 = vld [vmem:[%s1 + $0x658] sm:$0xff]
    %v752 = vld [vmem:[%s1 + $0x660] sm:$0xff]
    %v753 = vld [vmem:[%s1 + $0x668] sm:$0xff]
    %v754 = vld [vmem:[%s1 + $0x670] sm:$0xff]
    %v755 = vld [vmem:[%s1 + $0x678] sm:$0xff]
    %v756 = vld [vmem:[%s1 + $0x680] sm:$0xff]
    %v757 = vld [vmem:[%s1 + $0x688] sm:$0xff]
    %v758 = vld [vmem:[%s1 + $0x690] sm:$0xff]
    %v759 = vld [vmem:[%s1 + $0x698] sm:$0xff]
    %v760 = vld [vmem:[%s1 + $0x6a0] sm:$0xff]
    %v761 = vld [vmem:[%s1 + $0x6a8] sm:$0xff]
    %v762 = vld [vmem:[%s1 + $0x6b0] sm:$0xff]
    %v763 = vld [vmem:[%s1 + $0x6b8] sm:$0xff]
    %v764 = vld [vmem:[%s1 + $0x6c0] sm:$0xff]
    %v765 = vld [vmem:[%s1 + $0x6c8] sm:$0xff]
    %v766 = vld [vmem:[%s1 + $0x6d0] sm:$0xff]
    %v767 = vld [vmem:[%s1 + $0x6d8] sm:$0xff]
    %v768 = vld [vmem:[%s1 + $0x6e0] sm:$0xff]
    %v769 = vld [vmem:[%s1 + $0x6e8] sm:$0xff]
    %v770 = vld [vmem:[%s1 + $0x6f0] sm:$0xff]
    %v771 = vld [vmem:[%s1 + $0x6f8] sm:$0xff]
    %v772 = vld [vmem:[%s1 + $0x700] sm:$0xff]
    %v773 = vld [vmem:[%s1 + $0x708] sm:$0xff]
    %v774 = vld [vmem:[%s1 + $0x710] sm:$0xff]
    %v775 = vld [vmem:[%s1 + $0x718] sm:$0xff]
    %v776 = vld [vmem:[%s1 + $0x720] sm:$0xff]
    %v777 = vld [vmem:[%s1 + $0x728] sm:$0xff]
    %v778 = vld [vmem:[%s1 + $0x730] sm:$0xff]
    %v779 = vld [vmem:[%s1 + $0x738] sm:$0xff]
    %v780 = vld [vmem:[%s1 + $0x740] sm:$0xff]
    %v781 = vld [vmem:[%s1 + $0x748] sm:$0xff]
    %v782 = vld [vmem:[%s1 + $0x750] sm:$0xff]
    %v783 = vld [vmem:[%s1 + $0x758] sm:$0xff]
    %v784 = vld [vmem:[%s1 + $0x760] sm:$0xff]
    %v785 = vld [vmem:[%s1 + $0x768] sm:$0xff]
    %v786 = vld [vmem:[%s1 + $0x770] sm:$0xff]
    %v787 = vld [vmem:[%s1 + $0x778] sm:$0xff]
    %v788 = vld [vmem:[%s1 + $0x780] sm:$0xff]
    %v789 = vld [vmem:[%s1 + $0x788] sm:$0xff]
    %v790 = vld [vmem:[%s1 + $0x790] sm:$0xff]
    %v791 = vld [vmem:[%s1 + $0x798] sm:$0xff]
    %v792 = vld [vmem:[%s1 + $0x7a0] sm:$0xff]
    %v793 = vld [vmem:[%s1 + $0x7a8] sm:$0xff]
    %v794 = vld [vmem:[%s1 + $0x7b0] sm:$0xff]
    %v795 = vld [vmem:[%s1 + $0x7b8] sm:$0xff]
    %v796 = vld [vmem:[%s1 + $0x7c0] sm:$0xff]
    %v797 = vld [vmem:[%s1 + $0x7c8] sm:$0xff]
    %v798 = vld [vmem:[%s1 + $0x7d0] sm:$0xff]
    %v799 = vld [vmem:[%s1 + $0x7d8] sm:$0xff]
    %v800 = vld [vmem:[%s1 + $0x7e0] sm:$0xff]
    %v801 = vld [vmem:[%s1 + $0x7e8] sm:$0xff]
    %v802 = vld [vmem:[%s1 + $0x7f0] sm:$0xff]
    %v803 = vld [vmem:[%s1 + $0x7f8] sm:$0xff]
    %v804 = vld [vmem:[%s2] sm:$0x1]
    %v806 = vlaneseq
    %v807 = vshrl.u32 %v806, 7
    %v808 = vsub.s32 0, %v807
    %v809 = vrot.slane %v804, %v808
    %v811 = vsel %vm511, %v322, %v306
    %v812 = vsel %vm511, %v323, %v307
    %v813 = vsel %vm511, %v324, %v308
    %v814 = vsel %vm511, %v325, %v309
    %v815 = vsel %vm511, %v326, %v310
    %v816 = vsel %vm511, %v327, %v311
    %v817 = vsel %vm511, %v328, %v312
    %v818 = vsel %vm511, %v329, %v313
    %v819 = vsel %vm511, %v330, %v314
    %v820 = vsel %vm511, %v331, %v315
    %v821 = vsel %vm511, %v332, %v316
    %v822 = vsel %vm511, %v333, %v317
    %v823 = vsel %vm511, %v334, %v318
    %v824 = vsel %vm511, %v335, %v319
    %v825 = vsel %vm511, %v336, %v320
    %v826 = vsel %vm511, %v337, %v321
    %843 = vmatprep.subr.mxu0 0.0
    %844 = vmatpush1.msra.mxu0 %v563
    %845 = vmatprep.subr.mxu0 0.0
    %846 = vmatpush1.msra.mxu0 %v562
    %847 = vmatprep.subr.mxu0 0.0
    %848 = vmatpush1.msra.mxu0 %v561
    %849 = vmatprep.subr.mxu0 0.0
    %850 = vmatpush1.msra.mxu0 %v560
    %851 = vmatprep.subr.mxu0 0.0
    %852 = vmatpush1.msra.mxu0 %v559
    %853 = vmatprep.subr.mxu0 0.0
    %854 = vmatpush1.msra.mxu0 %v558
    %855 = vmatprep.subr.mxu0 0.0
    %856 = vmatpush1.msra.mxu0 %v557
    %857 = vmatprep.subr.mxu0 0.0
    %858 = vmatpush1.msra.mxu0 %v556
    %859 = vmatprep.subr.mxu0 0.0
    %860 = vmatpush1.msra.mxu0 %v555
    %861 = vmatprep.subr.mxu0 0.0
    %862 = vmatpush1.msra.mxu0 %v554
    %863 = vmatprep.subr.mxu0 0.0
    %864 = vmatpush1.msra.mxu0 %v553
    %865 = vmatprep.subr.mxu0 0.0
    %866 = vmatpush1.msra.mxu0 %v552
    %867 = vmatprep.subr.mxu0 0.0
    %868 = vmatpush1.msra.mxu0 %v551
    %869 = vmatprep.subr.mxu0 0.0
    %870 = vmatpush1.msra.mxu0 %v550
    %871 = vmatprep.subr.mxu0 0.0
    %872 = vmatpush1.msra.mxu0 %v549
    %873 = vmatprep.subr.mxu0 0.0
    %874 = vmatpush1.msra.mxu0 %v548
    %875 = vmatprep.subr.mxu0 0.0
    %876 = vmatpush2.msra.mxu0 %v579
    %877 = vmatprep.subr.mxu0 0.0
    %878 = vmatpush2.msra.mxu0 %v578
    %879 = vmatprep.subr.mxu0 0.0
    %880 = vmatpush2.msra.mxu0 %v577
    %881 = vmatprep.subr.mxu0 0.0
    %882 = vmatpush2.msra.mxu0 %v576
    %883 = vmatprep.subr.mxu0 0.0
    %884 = vmatpush2.msra.mxu0 %v575
    %885 = vmatprep.subr.mxu0 0.0
    %886 = vmatpush2.msra.mxu0 %v574
    %887 = vmatprep.subr.mxu0 0.0
    %888 = vmatpush2.msra.mxu0 %v573
    %889 = vmatprep.subr.mxu0 0.0
    %890 = vmatpush2.msra.mxu0 %v572
    %891 = vmatprep.subr.mxu0 0.0
    %892 = vmatpush2.msra.mxu0 %v571
    %893 = vmatprep.subr.mxu0 0.0
    %894 = vmatpush2.msra.mxu0 %v570
    %895 = vmatprep.subr.mxu0 0.0
    %896 = vmatpush2.msra.mxu0 %v569
    %897 = vmatprep.subr.mxu0 0.0
    %898 = vmatpush2.msra.mxu0 %v568
    %899 = vmatprep.subr.mxu0 0.0
    %900 = vmatpush2.msra.mxu0 %v567
    %901 = vmatprep.subr.mxu0 0.0
    %902 = vmatpush2.msra.mxu0 %v566
    %903 = vmatprep.subr.mxu0 0.0
    %904 = vmatpush2.msra.mxu0 %v565
    %905 = vmatprep.subr.mxu0 0.0
    %906 = vmatpush2.msra.mxu0 %v564
    %907 = vmatprep.mubr.f32.mxu0 %v812
    %908 = vmatmul.mubr.f32.gmra.mxu0 %v811
    %v909 = vpop.f32.mrf.mxu0
    %v910 = vadd.f32 %v809, %v909
    %v911 = vpop.f32.mrf.mxu0
    %912 = vdwg.mxu0
    %913 = vmatprep.subr.mxu0 0.0
    %914 = vmatpush1.msra.mxu0 %v595
    %915 = vmatprep.subr.mxu0 0.0
    %916 = vmatpush1.msra.mxu0 %v594
    %917 = vmatprep.subr.mxu0 0.0
    %918 = vmatpush1.msra.mxu0 %v593
    %919 = vmatprep.subr.mxu0 0.0
    %920 = vmatpush1.msra.mxu0 %v592
    %921 = vmatprep.subr.mxu0 0.0
    %922 = vmatpush1.msra.mxu0 %v591
    %923 = vmatprep.subr.mxu0 0.0
    %924 = vmatpush1.msra.mxu0 %v590
    %925 = vmatprep.subr.mxu0 0.0
    %926 = vmatpush1.msra.mxu0 %v589
    %927 = vmatprep.subr.mxu0 0.0
    %928 = vmatpush1.msra.mxu0 %v588
    %929 = vmatprep.subr.mxu0 0.0
    %930 = vmatpush1.msra.mxu0 %v587
    %931 = vmatprep.subr.mxu0 0.0
    %932 = vmatpush1.msra.mxu0 %v586
    %933 = vmatprep.subr.mxu0 0.0
    %934 = vmatpush1.msra.mxu0 %v585
    %935 = vmatprep.subr.mxu0 0.0
    %936 = vmatpush1.msra.mxu0 %v584
    %937 = vmatprep.subr.mxu0 0.0
    %938 = vmatpush1.msra.mxu0 %v583
    %939 = vmatprep.subr.mxu0 0.0
    %940 = vmatpush1.msra.mxu0 %v582
    %941 = vmatprep.subr.mxu0 0.0
    %942 = vmatpush1.msra.mxu0 %v581
    %943 = vmatprep.subr.mxu0 0.0
    %944 = vmatpush1.msra.mxu0 %v580
    %945 = vmatprep.subr.mxu0 0.0
    %946 = vmatpush2.msra.mxu0 %v611
    %947 = vmatprep.subr.mxu0 0.0
    %948 = vmatpush2.msra.mxu0 %v610
    %949 = vmatprep.subr.mxu0 0.0
    %950 = vmatpush2.msra.mxu0 %v609
    %951 = vmatprep.subr.mxu0 0.0
    %952 = vmatpush2.msra.mxu0 %v608
    %953 = vmatprep.subr.mxu0 0.0
    %954 = vmatpush2.msra.mxu0 %v607
    %955 = vmatprep.subr.mxu0 0.0
    %956 = vmatpush2.msra.mxu0 %v606
    %957 = vmatprep.subr.mxu0 0.0
    %958 = vmatpush2.msra.mxu0 %v605
    %959 = vmatprep.subr.mxu0 0.0
    %960 = vmatpush2.msra.mxu0 %v604
    %961 = vmatprep.subr.mxu0 0.0
    %962 = vmatpush2.msra.mxu0 %v603
    %963 = vmatprep.subr.mxu0 0.0
    %964 = vmatpush2.msra.mxu0 %v602
    %965 = vmatprep.subr.mxu0 0.0
    %966 = vmatpush2.msra.mxu0 %v601
    %967 = vmatprep.subr.mxu0 0.0
    %968 = vmatpush2.msra.mxu0 %v600
    %969 = vmatprep.subr.mxu0 0.0
    %970 = vmatpush2.msra.mxu0 %v599
    %971 = vmatprep.subr.mxu0 0.0
    %972 = vmatpush2.msra.mxu0 %v598
    %973 = vmatprep.subr.mxu0 0.0
    %974 = vmatpush2.msra.mxu0 %v597
    %975 = vmatprep.subr.mxu0 0.0
    %976 = vmatpush2.msra.mxu0 %v596
    %977 = vmatprep.mubr.f32.mxu0 %v814
    %978 = vmatmul.mubr.f32.gmra.mxu0 %v813
    %v979 = vpop.f32.mrf.mxu0
    %v980 = vadd.f32 %v910, %v979
    %v981 = vpop.f32.mrf.mxu0
    %982 = vdwg.mxu0
    %983 = vmatprep.subr.mxu0 0.0
    %984 = vmatpush1.msra.mxu0 %v627
    %985 = vmatprep.subr.mxu0 0.0
    %986 = vmatpush1.msra.mxu0 %v626
    %987 = vmatprep.subr.mxu0 0.0
    %988 = vmatpush1.msra.mxu0 %v625
    %989 = vmatprep.subr.mxu0 0.0
    %990 = vmatpush1.msra.mxu0 %v624
    %991 = vmatprep.subr.mxu0 0.0
    %992 = vmatpush1.msra.mxu0 %v623
    %993 = vmatprep.subr.mxu0 0.0
    %994 = vmatpush1.msra.mxu0 %v622
    %995 = vmatprep.subr.mxu0 0.0
    %996 = vmatpush1.msra.mxu0 %v621
    %997 = vmatprep.subr.mxu0 0.0
    %998 = vmatpush1.msra.mxu0 %v620
    %999 = vmatprep.subr.mxu0 0.0
    %1000 = vmatpush1.msra.mxu0 %v619
    %1001 = vmatprep.subr.mxu0 0.0
    %1002 = vmatpush1.msra.mxu0 %v618
    %1003 = vmatprep.subr.mxu0 0.0
    %1004 = vmatpush1.msra.mxu0 %v617
    %1005 = vmatprep.subr.mxu0 0.0
    %1006 = vmatpush1.msra.mxu0 %v616
    %1007 = vmatprep.subr.mxu0 0.0
    %1008 = vmatpush1.msra.mxu0 %v615
    %1009 = vmatprep.subr.mxu0 0.0
    %1010 = vmatpush1.msra.mxu0 %v614
    %1011 = vmatprep.subr.mxu0 0.0
    %1012 = vmatpush1.msra.mxu0 %v613
    %1013 = vmatprep.subr.mxu0 0.0
    %1014 = vmatpush1.msra.mxu0 %v612
    %1015 = vmatprep.subr.mxu0 0.0
    %1016 = vmatpush2.msra.mxu0 %v643
    %1017 = vmatprep.subr.mxu0 0.0
    %1018 = vmatpush2.msra.mxu0 %v642
    %1019 = vmatprep.subr.mxu0 0.0
    %1020 = vmatpush2.msra.mxu0 %v641
    %1021 = vmatprep.subr.mxu0 0.0
    %1022 = vmatpush2.msra.mxu0 %v640
    %1023 = vmatprep.subr.mxu0 0.0
    %1024 = vmatpush2.msra.mxu0 %v639
    %1025 = vmatprep.subr.mxu0 0.0
    %1026 = vmatpush2.msra.mxu0 %v638
    %1027 = vmatprep.subr.mxu0 0.0
    %1028 = vmatpush2.msra.mxu0 %v637
    %1029 = vmatprep.subr.mxu0 0.0
    %1030 = vmatpush2.msra.mxu0 %v636
    %1031 = vmatprep.subr.mxu0 0.0
    %1032 = vmatpush2.msra.mxu0 %v635
    %1033 = vmatprep.subr.mxu0 0.0
    %1034 = vmatpush2.msra.mxu0 %v634
    %1035 = vmatprep.subr.mxu0 0.0
    %1036 = vmatpush2.msra.mxu0 %v633
    %1037 = vmatprep.subr.mxu0 0.0
    %1038 = vmatpush2.msra.mxu0 %v632
    %1039 = vmatprep.subr.mxu0 0.0
    %1040 = vmatpush2.msra.mxu0 %v631
    %1041 = vmatprep.subr.mxu0 0.0
    %1042 = vmatpush2.msra.mxu0 %v630
    %1043 = vmatprep.subr.mxu0 0.0
    %1044 = vmatpush2.msra.mxu0 %v629
    %1045 = vmatprep.subr.mxu0 0.0
    %1046 = vmatpush2.msra.mxu0 %v628
    %1047 = vmatprep.mubr.f32.mxu0 %v816
    %1048 = vmatmul.mubr.f32.gmra.mxu0 %v815
    %v1049 = vpop.f32.mrf.mxu0
    %v1050 = vadd.f32 %v980, %v1049
    %v1051 = vpop.f32.mrf.mxu0
    %1052 = vdwg.mxu0
    %1053 = vmatprep.subr.mxu0 0.0
    %1054 = vmatpush1.msra.mxu0 %v659
    %1055 = vmatprep.subr.mxu0 0.0
    %1056 = vmatpush1.msra.mxu0 %v658
    %1057 = vmatprep.subr.mxu0 0.0
    %1058 = vmatpush1.msra.mxu0 %v657
    %1059 = vmatprep.subr.mxu0 0.0
    %1060 = vmatpush1.msra.mxu0 %v656
    %1061 = vmatprep.subr.mxu0 0.0
    %1062 = vmatpush1.msra.mxu0 %v655
    %1063 = vmatprep.subr.mxu0 0.0
    %1064 = vmatpush1.msra.mxu0 %v654
    %1065 = vmatprep.subr.mxu0 0.0
    %1066 = vmatpush1.msra.mxu0 %v653
    %1067 = vmatprep.subr.mxu0 0.0
    %1068 = vmatpush1.msra.mxu0 %v652
    %1069 = vmatprep.subr.mxu0 0.0
    %1070 = vmatpush1.msra.mxu0 %v651
    %1071 = vmatprep.subr.mxu0 0.0
    %1072 = vmatpush1.msra.mxu0 %v650
    %1073 = vmatprep.subr.mxu0 0.0
    %1074 = vmatpush1.msra.mxu0 %v649
    %1075 = vmatprep.subr.mxu0 0.0
    %1076 = vmatpush1.msra.mxu0 %v648
    %1077 = vmatprep.subr.mxu0 0.0
    %1078 = vmatpush1.msra.mxu0 %v647
    %1079 = vmatprep.subr.mxu0 0.0
    %1080 = vmatpush1.msra.mxu0 %v646
    %1081 = vmatprep.subr.mxu0 0.0
    %1082 = vmatpush1.msra.mxu0 %v645
    %1083 = vmatprep.subr.mxu0 0.0
    %1084 = vmatpush1.msra.mxu0 %v644
    %1085 = vmatprep.subr.mxu0 0.0
    %1086 = vmatpush2.msra.mxu0 %v675
    %1087 = vmatprep.subr.mxu0 0.0
    %1088 = vmatpush2.msra.mxu0 %v674
    %1089 = vmatprep.subr.mxu0 0.0
    %1090 = vmatpush2.msra.mxu0 %v673
    %1091 = vmatprep.subr.mxu0 0.0
    %1092 = vmatpush2.msra.mxu0 %v672
    %1093 = vmatprep.subr.mxu0 0.0
    %1094 = vmatpush2.msra.mxu0 %v671
    %1095 = vmatprep.subr.mxu0 0.0
    %1096 = vmatpush2.msra.mxu0 %v670
    %1097 = vmatprep.subr.mxu0 0.0
    %1098 = vmatpush2.msra.mxu0 %v669
    %1099 = vmatprep.subr.mxu0 0.0
    %1100 = vmatpush2.msra.mxu0 %v668
    %1101 = vmatprep.subr.mxu0 0.0
    %1102 = vmatpush2.msra.mxu0 %v667
    %1103 = vmatprep.subr.mxu0 0.0
    %1104 = vmatpush2.msra.mxu0 %v666
    %1105 = vmatprep.subr.mxu0 0.0
    %1106 = vmatpush2.msra.mxu0 %v665
    %1107 = vmatprep.subr.mxu0 0.0
    %1108 = vmatpush2.msra.mxu0 %v664
    %1109 = vmatprep.subr.mxu0 0.0
    %1110 = vmatpush2.msra.mxu0 %v663
    %1111 = vmatprep.subr.mxu0 0.0
    %1112 = vmatpush2.msra.mxu0 %v662
    %1113 = vmatprep.subr.mxu0 0.0
    %1114 = vmatpush2.msra.mxu0 %v661
    %1115 = vmatprep.subr.mxu0 0.0
    %1116 = vmatpush2.msra.mxu0 %v660
    %1117 = vmatprep.mubr.f32.mxu0 %v818
    %1118 = vmatmul.mubr.f32.gmra.mxu0 %v817
    %v1119 = vpop.f32.mrf.mxu0
    %v1120 = vadd.f32 %v1050, %v1119
    %v1121 = vpop.f32.mrf.mxu0
    %1122 = vdwg.mxu0
    %1123 = vmatprep.subr.mxu0 0.0
    %1124 = vmatpush1.msra.mxu0 %v691
    %1125 = vmatprep.subr.mxu0 0.0
    %1126 = vmatpush1.msra.mxu0 %v690
    %1127 = vmatprep.subr.mxu0 0.0
    %1128 = vmatpush1.msra.mxu0 %v689
    %1129 = vmatprep.subr.mxu0 0.0
    %1130 = vmatpush1.msra.mxu0 %v688
    %1131 = vmatprep.subr.mxu0 0.0
    %1132 = vmatpush1.msra.mxu0 %v687
    %1133 = vmatprep.subr.mxu0 0.0
    %1134 = vmatpush1.msra.mxu0 %v686
    %1135 = vmatprep.subr.mxu0 0.0
    %1136 = vmatpush1.msra.mxu0 %v685
    %1137 = vmatprep.subr.mxu0 0.0
    %1138 = vmatpush1.msra.mxu0 %v684
    %1139 = vmatprep.subr.mxu0 0.0
    %1140 = vmatpush1.msra.mxu0 %v683
    %1141 = vmatprep.subr.mxu0 0.0
    %1142 = vmatpush1.msra.mxu0 %v682
    %1143 = vmatprep.subr.mxu0 0.0
    %1144 = vmatpush1.msra.mxu0 %v681
    %1145 = vmatprep.subr.mxu0 0.0
    %1146 = vmatpush1.msra.mxu0 %v680
    %1147 = vmatprep.subr.mxu0 0.0
    %1148 = vmatpush1.msra.mxu0 %v679
    %1149 = vmatprep.subr.mxu0 0.0
    %1150 = vmatpush1.msra.mxu0 %v678
    %1151 = vmatprep.subr.mxu0 0.0
    %1152 = vmatpush1.msra.mxu0 %v677
    %1153 = vmatprep.subr.mxu0 0.0
    %1154 = vmatpush1.msra.mxu0 %v676
    %1155 = vmatprep.subr.mxu0 0.0
    %1156 = vmatpush2.msra.mxu0 %v707
    %1157 = vmatprep.subr.mxu0 0.0
    %1158 = vmatpush2.msra.mxu0 %v706
    %1159 = vmatprep.subr.mxu0 0.0
    %1160 = vmatpush2.msra.mxu0 %v705
    %1161 = vmatprep.subr.mxu0 0.0
    %1162 = vmatpush2.msra.mxu0 %v704
    %1163 = vmatprep.subr.mxu0 0.0
    %1164 = vmatpush2.msra.mxu0 %v703
    %1165 = vmatprep.subr.mxu0 0.0
    %1166 = vmatpush2.msra.mxu0 %v702
    %1167 = vmatprep.subr.mxu0 0.0
    %1168 = vmatpush2.msra.mxu0 %v701
    %1169 = vmatprep.subr.mxu0 0.0
    %1170 = vmatpush2.msra.mxu0 %v700
    %1171 = vmatprep.subr.mxu0 0.0
    %1172 = vmatpush2.msra.mxu0 %v699
    %1173 = vmatprep.subr.mxu0 0.0
    %1174 = vmatpush2.msra.mxu0 %v698
    %1175 = vmatprep.subr.mxu0 0.0
    %1176 = vmatpush2.msra.mxu0 %v697
    %1177 = vmatprep.subr.mxu0 0.0
    %1178 = vmatpush2.msra.mxu0 %v696
    %1179 = vmatprep.subr.mxu0 0.0
    %1180 = vmatpush2.msra.mxu0 %v695
    %1181 = vmatprep.subr.mxu0 0.0
    %1182 = vmatpush2.msra.mxu0 %v694
    %1183 = vmatprep.subr.mxu0 0.0
    %1184 = vmatpush2.msra.mxu0 %v693
    %1185 = vmatprep.subr.mxu0 0.0
    %1186 = vmatpush2.msra.mxu0 %v692
    %1187 = vmatprep.mubr.f32.mxu0 %v820
    %1188 = vmatmul.mubr.f32.gmra.mxu0 %v819
    %v1189 = vpop.f32.mrf.mxu0
    %v1190 = vadd.f32 %v1120, %v1189
    %v1191 = vpop.f32.mrf.mxu0
    %1192 = vdwg.mxu0
    %1193 = vmatprep.subr.mxu0 0.0
    %1194 = vmatpush1.msra.mxu0 %v723
    %1195 = vmatprep.subr.mxu0 0.0
    %1196 = vmatpush1.msra.mxu0 %v722
    %1197 = vmatprep.subr.mxu0 0.0
    %1198 = vmatpush1.msra.mxu0 %v721
    %1199 = vmatprep.subr.mxu0 0.0
    %1200 = vmatpush1.msra.mxu0 %v720
    %1201 = vmatprep.subr.mxu0 0.0
    %1202 = vmatpush1.msra.mxu0 %v719
    %1203 = vmatprep.subr.mxu0 0.0
    %1204 = vmatpush1.msra.mxu0 %v718
    %1205 = vmatprep.subr.mxu0 0.0
    %1206 = vmatpush1.msra.mxu0 %v717
    %1207 = vmatprep.subr.mxu0 0.0
    %1208 = vmatpush1.msra.mxu0 %v716
    %1209 = vmatprep.subr.mxu0 0.0
    %1210 = vmatpush1.msra.mxu0 %v715
    %1211 = vmatprep.subr.mxu0 0.0
    %1212 = vmatpush1.msra.mxu0 %v714
    %1213 = vmatprep.subr.mxu0 0.0
    %1214 = vmatpush1.msra.mxu0 %v713
    %1215 = vmatprep.subr.mxu0 0.0
    %1216 = vmatpush1.msra.mxu0 %v712
    %1217 = vmatprep.subr.mxu0 0.0
    %1218 = vmatpush1.msra.mxu0 %v711
    %1219 = vmatprep.subr.mxu0 0.0
    %1220 = vmatpush1.msra.mxu0 %v710
    %1221 = vmatprep.subr.mxu0 0.0
    %1222 = vmatpush1.msra.mxu0 %v709
    %1223 = vmatprep.subr.mxu0 0.0
    %1224 = vmatpush1.msra.mxu0 %v708
    %1225 = vmatprep.subr.mxu0 0.0
    %1226 = vmatpush2.msra.mxu0 %v739
    %1227 = vmatprep.subr.mxu0 0.0
    %1228 = vmatpush2.msra.mxu0 %v738
    %1229 = vmatprep.subr.mxu0 0.0
    %1230 = vmatpush2.msra.mxu0 %v737
    %1231 = vmatprep.subr.mxu0 0.0
    %1232 = vmatpush2.msra.mxu0 %v736
    %1233 = vmatprep.subr.mxu0 0.0
    %1234 = vmatpush2.msra.mxu0 %v735
    %1235 = vmatprep.subr.mxu0 0.0
    %1236 = vmatpush2.msra.mxu0 %v734
    %1237 = vmatprep.subr.mxu0 0.0
    %1238 = vmatpush2.msra.mxu0 %v733
    %1239 = vmatprep.subr.mxu0 0.0
    %1240 = vmatpush2.msra.mxu0 %v732
    %1241 = vmatprep.subr.mxu0 0.0
    %1242 = vmatpush2.msra.mxu0 %v731
    %1243 = vmatprep.subr.mxu0 0.0
    %1244 = vmatpush2.msra.mxu0 %v730
    %1245 = vmatprep.subr.mxu0 0.0
    %1246 = vmatpush2.msra.mxu0 %v729
    %1247 = vmatprep.subr.mxu0 0.0
    %1248 = vmatpush2.msra.mxu0 %v728
    %1249 = vmatprep.subr.mxu0 0.0
    %1250 = vmatpush2.msra.mxu0 %v727
    %1251 = vmatprep.subr.mxu0 0.0
    %1252 = vmatpush2.msra.mxu0 %v726
    %1253 = vmatprep.subr.mxu0 0.0
    %1254 = vmatpush2.msra.mxu0 %v725
    %1255 = vmatprep.subr.mxu0 0.0
    %1256 = vmatpush2.msra.mxu0 %v724
    %1257 = vmatprep.mubr.f32.mxu0 %v822
    %1258 = vmatmul.mubr.f32.gmra.mxu0 %v821
    %v1259 = vpop.f32.mrf.mxu0
    %v1260 = vadd.f32 %v1190, %v1259
    %v1261 = vpop.f32.mrf.mxu0
    %1262 = vdwg.mxu0
    %1263 = vmatprep.subr.mxu0 0.0
    %1264 = vmatpush1.msra.mxu0 %v755
    %1265 = vmatprep.subr.mxu0 0.0
    %1266 = vmatpush1.msra.mxu0 %v754
    %1267 = vmatprep.subr.mxu0 0.0
    %1268 = vmatpush1.msra.mxu0 %v753
    %1269 = vmatprep.subr.mxu0 0.0
    %1270 = vmatpush1.msra.mxu0 %v752
    %1271 = vmatprep.subr.mxu0 0.0
    %1272 = vmatpush1.msra.mxu0 %v751
    %1273 = vmatprep.subr.mxu0 0.0
    %1274 = vmatpush1.msra.mxu0 %v750
    %1275 = vmatprep.subr.mxu0 0.0
    %1276 = vmatpush1.msra.mxu0 %v749
    %1277 = vmatprep.subr.mxu0 0.0
    %1278 = vmatpush1.msra.mxu0 %v748
    %1279 = vmatprep.subr.mxu0 0.0
    %1280 = vmatpush1.msra.mxu0 %v747
    %1281 = vmatprep.subr.mxu0 0.0
    %1282 = vmatpush1.msra.mxu0 %v746
    %1283 = vmatprep.subr.mxu0 0.0
    %1284 = vmatpush1.msra.mxu0 %v745
    %1285 = vmatprep.subr.mxu0 0.0
    %1286 = vmatpush1.msra.mxu0 %v744
    %1287 = vmatprep.subr.mxu0 0.0
    %1288 = vmatpush1.msra.mxu0 %v743
    %1289 = vmatprep.subr.mxu0 0.0
    %1290 = vmatpush1.msra.mxu0 %v742
    %1291 = vmatprep.subr.mxu0 0.0
    %1292 = vmatpush1.msra.mxu0 %v741
    %1293 = vmatprep.subr.mxu0 0.0
    %1294 = vmatpush1.msra.mxu0 %v740
    %1295 = vmatprep.subr.mxu0 0.0
    %1296 = vmatpush2.msra.mxu0 %v771
    %1297 = vmatprep.subr.mxu0 0.0
    %1298 = vmatpush2.msra.mxu0 %v770
    %1299 = vmatprep.subr.mxu0 0.0
    %1300 = vmatpush2.msra.mxu0 %v769
    %1301 = vmatprep.subr.mxu0 0.0
    %1302 = vmatpush2.msra.mxu0 %v768
    %1303 = vmatprep.subr.mxu0 0.0
    %1304 = vmatpush2.msra.mxu0 %v767
    %1305 = vmatprep.subr.mxu0 0.0
    %1306 = vmatpush2.msra.mxu0 %v766
    %1307 = vmatprep.subr.mxu0 0.0
    %1308 = vmatpush2.msra.mxu0 %v765
    %1309 = vmatprep.subr.mxu0 0.0
    %1310 = vmatpush2.msra.mxu0 %v764
    %1311 = vmatprep.subr.mxu0 0.0
    %1312 = vmatpush2.msra.mxu0 %v763
    %1313 = vmatprep.subr.mxu0 0.0
    %1314 = vmatpush2.msra.mxu0 %v762
    %1315 = vmatprep.subr.mxu0 0.0
    %1316 = vmatpush2.msra.mxu0 %v761
    %1317 = vmatprep.subr.mxu0 0.0
    %1318 = vmatpush2.msra.mxu0 %v760
    %1319 = vmatprep.subr.mxu0 0.0
    %1320 = vmatpush2.msra.mxu0 %v759
    %1321 = vmatprep.subr.mxu0 0.0
    %1322 = vmatpush2.msra.mxu0 %v758
    %1323 = vmatprep.subr.mxu0 0.0
    %1324 = vmatpush2.msra.mxu0 %v757
    %1325 = vmatprep.subr.mxu0 0.0
    %1326 = vmatpush2.msra.mxu0 %v756
    %1327 = vmatprep.mubr.f32.mxu0 %v824
    %1328 = vmatmul.mubr.f32.gmra.mxu0 %v823
    %v1329 = vpop.f32.mrf.mxu0
    %v1330 = vadd.f32 %v1260, %v1329
    %v1331 = vpop.f32.mrf.mxu0
    %1332 = vdwg.mxu0
    %1333 = vmatprep.subr.mxu0 0.0
    %1334 = vmatpush1.msra.mxu0 %v787
    %1335 = vmatprep.subr.mxu0 0.0
    %1336 = vmatpush1.msra.mxu0 %v786
    %1337 = vmatprep.subr.mxu0 0.0
    %1338 = vmatpush1.msra.mxu0 %v785
    %1339 = vmatprep.subr.mxu0 0.0
    %1340 = vmatpush1.msra.mxu0 %v784
    %1341 = vmatprep.subr.mxu0 0.0
    %1342 = vmatpush1.msra.mxu0 %v783
    %1343 = vmatprep.subr.mxu0 0.0
    %1344 = vmatpush1.msra.mxu0 %v782
    %1345 = vmatprep.subr.mxu0 0.0
    %1346 = vmatpush1.msra.mxu0 %v781
    %1347 = vmatprep.subr.mxu0 0.0
    %1348 = vmatpush1.msra.mxu0 %v780
    %1349 = vmatprep.subr.mxu0 0.0
    %1350 = vmatpush1.msra.mxu0 %v779
    %1351 = vmatprep.subr.mxu0 0.0
    %1352 = vmatpush1.msra.mxu0 %v778
    %1353 = vmatprep.subr.mxu0 0.0
    %1354 = vmatpush1.msra.mxu0 %v777
    %1355 = vmatprep.subr.mxu0 0.0
    %1356 = vmatpush1.msra.mxu0 %v776
    %1357 = vmatprep.subr.mxu0 0.0
    %1358 = vmatpush1.msra.mxu0 %v775
    %1359 = vmatprep.subr.mxu0 0.0
    %1360 = vmatpush1.msra.mxu0 %v774
    %1361 = vmatprep.subr.mxu0 0.0
    %1362 = vmatpush1.msra.mxu0 %v773
    %1363 = vmatprep.subr.mxu0 0.0
    %1364 = vmatpush1.msra.mxu0 %v772
    %1365 = vmatprep.subr.mxu0 0.0
    %1366 = vmatpush2.msra.mxu0 %v803
    %1367 = vmatprep.subr.mxu0 0.0
    %1368 = vmatpush2.msra.mxu0 %v802
    %1369 = vmatprep.subr.mxu0 0.0
    %1370 = vmatpush2.msra.mxu0 %v801
    %1371 = vmatprep.subr.mxu0 0.0
    %1372 = vmatpush2.msra.mxu0 %v800
    %1373 = vmatprep.subr.mxu0 0.0
    %1374 = vmatpush2.msra.mxu0 %v799
    %1375 = vmatprep.subr.mxu0 0.0
    %1376 = vmatpush2.msra.mxu0 %v798
    %1377 = vmatprep.subr.mxu0 0.0
    %1378 = vmatpush2.msra.mxu0 %v797
    %1379 = vmatprep.subr.mxu0 0.0
    %1380 = vmatpush2.msra.mxu0 %v796
    %1381 = vmatprep.subr.mxu0 0.0
    %1382 = vmatpush2.msra.mxu0 %v795
    %1383 = vmatprep.subr.mxu0 0.0
    %1384 = vmatpush2.msra.mxu0 %v794
    %1385 = vmatprep.subr.mxu0 0.0
    %1386 = vmatpush2.msra.mxu0 %v793
    %1387 = vmatprep.subr.mxu0 0.0
    %1388 = vmatpush2.msra.mxu0 %v792
    %1389 = vmatprep.subr.mxu0 0.0
    %1390 = vmatpush2.msra.mxu0 %v791
    %1391 = vmatprep.subr.mxu0 0.0
    %1392 = vmatpush2.msra.mxu0 %v790
    %1393 = vmatprep.subr.mxu0 0.0
    %1394 = vmatpush2.msra.mxu0 %v789
    %1395 = vmatprep.subr.mxu0 0.0
    %1396 = vmatpush2.msra.mxu0 %v788
    %1397 = vmatprep.mubr.f32.mxu0 %v826
    %1398 = vmatmul.mubr.f32.gmra.mxu0 %v825
    %v1399 = vpop.f32.mrf.mxu0
    %v1400 = vadd.f32 %v1330, %v1399
    %v1401 = vpop.f32.mrf.mxu0
    %1402 = vdwg.mxu0
    %vm1403 = vcmask 123904
    %1404 = vst.msk [vmem:[#allocation2] sm:$0x3] %vm1403, %v1400
    // Predicated region
    $region14: #{tpu_custom_call.1} parent=1 // pred_check
      _
    $region15: #{tpu_custom_call.1} parent=1 // pred_check_branch
      %1406 = sbr.rel (0) target = $region17
    $region16: #{tpu_custom_call.1} parent=1 // pred_region
      %s1408 = ssub.s32 32, 32
      %1409 = vsyncadd [#allocation3], %s1408
      %s1411 = sshll.u32 [#allocation2], 4
      %s1412 = int_to_ptr.vmem [resolvable:$true] %s1411
      %1414 = dma.vmem_to_hbm [thread:$0]  %s1412, 32, %s3, [#allocation3]
    $region17: #{tpu_custom_call.1} parent=1 // pred_fallthru
      _
    // Predicated region
    $region18: #{tpu_custom_call.1} parent=1 // pred_check
      _
    $region19: #{tpu_custom_call.1} parent=1 // pred_check_branch
      %1416 = sbr.rel (0) target = $region21
    $region20: #{tpu_custom_call.1} parent=1 // pred_region
      %s1418 = ssub.s32 512, 512
      %1419 = vsyncadd [#allocation5], %s1418
      %s1421 = sshll.u32 [#allocation4], 4
      %s1422 = int_to_ptr.vmem [resolvable:$true] %s1421
      %1424 = dma.vmem_to_hbm [thread:$0]  %s1422, 512, %s4, [#allocation5]
    $region21: #{tpu_custom_call.1} parent=1 // pred_fallthru
      _
    // Predicated region
    $region22: #{tpu_custom_call.1} parent=1 // pred_check
      _
    $region23: #{tpu_custom_call.1} parent=1 // pred_check_branch
      %1426 = sbr.rel (0) target = $region25
    $region24: #{tpu_custom_call.1} parent=1 // pred_region
      %1427 = dma.done [#allocation3], 32
    $region25: #{tpu_custom_call.1} parent=1 // pred_fallthru
      _
    // Predicated region
    $region26: #{tpu_custom_call.1} parent=1 // pred_check
      _
    $region27: #{tpu_custom_call.1} parent=1 // pred_check_branch
      %1429 = sbr.rel (0) target = $region29
    $region28: #{tpu_custom_call.1} parent=1 // pred_region
      %1430 = dma.done [#allocation5], 512
    $region29: #{tpu_custom_call.1} parent=1 // pred_fallthru
      _
    %1431 = vsyncpa [#allocation3], 1
    %1432 = vsyncpa [#allocation5], 1

</llo_original>
